<compile_context>
chip_gen: v6e
topology: v6e:2x2x1
jax: 0.10.0
libtpu: 0.0.40
codegen_flags: <defaults>
</compile_context>

<pallas_src>
import functools

import jax
import jax.numpy as jnp
from jax.experimental import pallas as pl
from jax.experimental.pallas import tpu as pltpu

_PROBS = (0.0, 0.1, 0.2, 0.3)
_LANES = 128
_MAX_TILE_ROWS = 2048  # ~1 MiB f32 per stream; fits default scoped VMEM on v5e/v6e/v7x

# (bit shift into the 32-bit hash, drop probability, 10-bit integer threshold)
_DROP_FIELDS = tuple(
    (10 * i, p, int(round(p * 1024))) for i, p in enumerate(_PROBS[1:])
)


def _mdrop_kernel(seed_ref, x_ref, o1_ref, o2_ref, o3_ref):
    x = x_ref[...]
    tile_rows, lanes = x.shape  # static block shape

    # Global element index (tiling-independent -> reproducible randomness).
    row = jax.lax.broadcasted_iota(jnp.uint32, x.shape, 0)
    col = jax.lax.broadcasted_iota(jnp.uint32, x.shape, 1)
    base_row = (pl.program_id(0) * tile_rows).astype(jnp.uint32)
    idx = (row + base_row) * jnp.uint32(lanes) + col

    # Mix in the seed and run a 32-bit integer finalizer hash ("lowbias32").
    seed_u = seed_ref[0].astype(jnp.uint32)
    h = idx ^ (seed_u * jnp.uint32(0x9E3779B9))
    h = (h ^ (h >> jnp.uint32(16))) * jnp.uint32(0x7FEB352D)
    h = (h ^ (h >> jnp.uint32(15))) * jnp.uint32(0x846CA68B)
    h = h ^ (h >> jnp.uint32(16))

    # One RNG word per element; each dropout uses a disjoint 10-bit field and
    # a pure integer threshold compare.  P(drop) = round(p*1024)/1024 (within
    # ~1e-3 of the exact p; same flavour of quantization as any bit-threshold
    # dropout).
    out_refs = (o1_ref, o2_ref, o3_ref)
    for (shift, p, thresh), o_ref in zip(_DROP_FIELDS, out_refs):
        field = (h >> jnp.uint32(shift)) & jnp.uint32(0x3FF)
        keep = field >= jnp.uint32(thresh)
        scale = jnp.asarray(1.0 / (1.0 - p), dtype=x.dtype)
        # Single fused select+scale: kept elements -> x / (1 - p), rest -> 0.
        o_ref[...] = (x * (keep.astype(x.dtype) * scale)).astype(o_ref.dtype)


def mdrop(x, seed: int = 0, *, tile_rows: int | None = None):
    """Runs Mdrop on an NCHW tensor; returns a list of 4 tensors (same shape).

    outs[0] (p = 0.0) is the input itself (identity); outs[1..3] are the
    p = 0.1 / 0.2 / 0.3 dropouts computed by the Pallas kernel.
    """
    orig_shape = x.shape
    total = x.size
    assert total % _LANES == 0, "example sized so it flattens to (rows, 128)"
    rows = total // _LANES

    if tile_rows is None:
        # Single grid step for small inputs; cap tile size for large ones.
        tile_rows = rows if rows <= _MAX_TILE_ROWS else _MAX_TILE_ROWS
        while rows % tile_rows:  # keep the grid exact
            tile_rows //= 2
    assert rows % tile_rows == 0

    x2d = x.reshape(rows, _LANES)
    seed_arr = jnp.array([seed], dtype=jnp.int32)

    n_rand_outs = len(_PROBS) - 1  # p = 0.0 is not materialized by the kernel
    grid_spec = pltpu.PrefetchScalarGridSpec(
        num_scalar_prefetch=1,
        grid=(rows // tile_rows,),
        in_specs=[
            pl.BlockSpec((tile_rows, _LANES), lambda i, seed: (i, 0)),
        ],
        out_specs=[
            pl.BlockSpec((tile_rows, _LANES), lambda i, seed: (i, 0))
            for _ in range(n_rand_outs)
        ],
    )

    rand_outs = pl.pallas_call(
        _mdrop_kernel,
        grid_spec=grid_spec,
        out_shape=[
            jax.ShapeDtypeStruct((rows, _LANES), x.dtype)
            for _ in range(n_rand_outs)
        ],
        compiler_params=pltpu.CompilerParams(
            # Tiles are fully independent -> shard across TCs on v7x.
            dimension_semantics=("parallel",)
        ),
    )(seed_arr, x2d)

    # p = 0.0 is the identity; returning x avoids an extra HBM write stream.
    return [x] + [o.reshape(orig_shape) for o in rand_outs]


if __name__ == "__main__":
    key = jax.random.PRNGKey(0)
    x = jax.random.normal(key, (2, 4, 16, 16), dtype=jnp.float32)

    outs = jax.jit(functools.partial(mdrop, seed=0))(x)
    outs = jax.block_until_ready(outs)

    # Sanity checks on dropout semantics.
    assert len(outs) == 4
    for o in outs:
        assert o.shape == x.shape and o.dtype == x.dtype
    # p = 0.0 is the exact identity.
    assert bool(jnp.all(outs[0] == x))
    # For p > 0: surviving elements equal x / (1 - p), the rest are zero, and
    # the empirical drop rate is near p.
    for p, o in zip(_PROBS[1:], outs[1:]):
        kept = o != 0
        assert bool(
            jnp.all(jnp.where(kept, jnp.abs(o * (1.0 - p) - x), 0.0) < 1e-4)
        )
        frac_dropped = 1.0 - float(jnp.mean(kept.astype(jnp.float32)))
        assert abs(frac_dropped - p) < 0.08, (p, frac_dropped)

    print("KERNEL_OK")
</pallas_src>

<mosaic_0001>
module attributes {stable_mosaic.version = 11 : i64} {
  func.func @_mdrop_kernel(%arg0: i32, %arg1: memref<1xi32, #tpu.memory_space<smem>>, %arg2: memref<16x128xf32, #tpu.memory_space<vmem>>, %arg3: memref<16x128xf32, #tpu.memory_space<vmem>>, %arg4: memref<16x128xf32, #tpu.memory_space<vmem>>, %arg5: memref<16x128xf32, #tpu.memory_space<vmem>>) attributes {dimension_semantics = [#tpu.dimension_semantics<parallel>], iteration_bounds = array<i64: 1>, scalar_prefetch = 1 : i64, scratch_operands = 0 : i64, tpu.core_type = #tpu.core_type<tc>, window_params = [{transform_indices = @transform_0, window_bounds = array<i64: 16, 128>}, {transform_indices = @transform_1, window_bounds = array<i64: 16, 128>}, {transform_indices = @transform_2, window_bounds = array<i64: 16, 128>}, {transform_indices = @transform_3, window_bounds = array<i64: 16, 128>}]} {
    %c0 = arith.constant 0 : index
    %c0_0 = arith.constant 0 : index
    %0 = vector.load %arg2[%c0, %c0_0] : memref<16x128xf32, #tpu.memory_space<vmem>>, vector<16x128xf32>
    %1 = tpu.iota {dimensions = array<i32: 0>} : vector<16x128xi32>
    %2 = tpu.iota {dimensions = array<i32: 1>} : vector<16x128xi32>
    %c16_i32 = arith.constant 16 : i32
    %3 = arith.muli %arg0, %c16_i32 : i32
    %4 = vector.broadcast %3 : i32 to vector<16x128xi32>
    %5 = arith.addi %1, %4 : vector<16x128xi32>
    %c128_i32 = arith.constant 128 : i32
    %6 = vector.broadcast %c128_i32 : i32 to vector<16x128xi32>
    %7 = arith.muli %5, %6 : vector<16x128xi32>
    %8 = arith.addi %7, %2 : vector<16x128xi32>
    %c0_1 = arith.constant 0 : index
    %9 = memref.load %arg1[%c0_1] : memref<1xi32, #tpu.memory_space<smem>>
    %c-1640531527_i32 = arith.constant -1640531527 : i32
    %10 = arith.muli %9, %c-1640531527_i32 : i32
    %11 = vector.broadcast %10 : i32 to vector<16x128xi32>
    %12 = arith.xori %8, %11 : vector<16x128xi32>
    %c16_i32_2 = arith.constant 16 : i32
    %13 = vector.broadcast %c16_i32_2 : i32 to vector<16x128xi32>
    %14 = arith.shrui %12, %13 : vector<16x128xi32>
    %15 = arith.xori %12, %14 : vector<16x128xi32>
    %c2146121005_i32 = arith.constant 2146121005 : i32
    %16 = vector.broadcast %c2146121005_i32 : i32 to vector<16x128xi32>
    %17 = arith.muli %15, %16 : vector<16x128xi32>
    %c15_i32 = arith.constant 15 : i32
    %18 = vector.broadcast %c15_i32 : i32 to vector<16x128xi32>
    %19 = arith.shrui %17, %18 : vector<16x128xi32>
    %20 = arith.xori %17, %19 : vector<16x128xi32>
    %c-2073254261_i32 = arith.constant -2073254261 : i32
    %21 = vector.broadcast %c-2073254261_i32 : i32 to vector<16x128xi32>
    %22 = arith.muli %20, %21 : vector<16x128xi32>
    %c16_i32_3 = arith.constant 16 : i32
    %23 = vector.broadcast %c16_i32_3 : i32 to vector<16x128xi32>
    %24 = arith.shrui %22, %23 : vector<16x128xi32>
    %25 = arith.xori %22, %24 : vector<16x128xi32>
    %c0_i32 = arith.constant 0 : i32
    %26 = vector.broadcast %c0_i32 : i32 to vector<16x128xi32>
    %27 = arith.shrui %25, %26 : vector<16x128xi32>
    %c1023_i32 = arith.constant 1023 : i32
    %28 = vector.broadcast %c1023_i32 : i32 to vector<16x128xi32>
    %29 = arith.andi %27, %28 : vector<16x128xi32>
    %c102_i32 = arith.constant 102 : i32
    %30 = vector.broadcast %c102_i32 : i32 to vector<16x128xi32>
    %31 = arith.cmpi uge, %29, %30 : vector<16x128xi32>
    %32 = arith.extui %31 : vector<16x128xi1> to vector<16x128xi32>
    %33 = arith.sitofp %32 : vector<16x128xi32> to vector<16x128xf32>
    %cst = arith.constant 1.11111116 : f32
    %34 = vector.broadcast %cst : f32 to vector<16x128xf32>
    %35 = arith.mulf %33, %34 : vector<16x128xf32>
    %36 = arith.mulf %0, %35 : vector<16x128xf32>
    %c0_4 = arith.constant 0 : index
    %c0_5 = arith.constant 0 : index
    %37 = vector.load %arg3[%c0_4, %c0_5] : memref<16x128xf32, #tpu.memory_space<vmem>>, vector<16x128xf32>
    tpu.vector_store %arg3[%c0_4, %c0_5], %36 {strides = array<i32>} : memref<16x128xf32, #tpu.memory_space<vmem>>, vector<16x128xf32>,
    %c10_i32 = arith.constant 10 : i32
    %38 = vector.broadcast %c10_i32 : i32 to vector<16x128xi32>
    %39 = arith.shrui %25, %38 : vector<16x128xi32>
    %c1023_i32_6 = arith.constant 1023 : i32
    %40 = vector.broadcast %c1023_i32_6 : i32 to vector<16x128xi32>
    %41 = arith.andi %39, %40 : vector<16x128xi32>
    %c205_i32 = arith.constant 205 : i32
    %42 = vector.broadcast %c205_i32 : i32 to vector<16x128xi32>
    %43 = arith.cmpi uge, %41, %42 : vector<16x128xi32>
    %44 = arith.extui %43 : vector<16x128xi1> to vector<16x128xi32>
    %45 = arith.sitofp %44 : vector<16x128xi32> to vector<16x128xf32>
    %cst_7 = arith.constant 1.250000e+00 : f32
    %46 = vector.broadcast %cst_7 : f32 to vector<16x128xf32>
    %47 = arith.mulf %45, %46 : vector<16x128xf32>
    %48 = arith.mulf %0, %47 : vector<16x128xf32>
    %c0_8 = arith.constant 0 : index
    %c0_9 = arith.constant 0 : index
    %49 = vector.load %arg4[%c0_8, %c0_9] : memref<16x128xf32, #tpu.memory_space<vmem>>, vector<16x128xf32>
    tpu.vector_store %arg4[%c0_8, %c0_9], %48 {strides = array<i32>} : memref<16x128xf32, #tpu.memory_space<vmem>>, vector<16x128xf32>,
    %c20_i32 = arith.constant 20 : i32
    %50 = vector.broadcast %c20_i32 : i32 to vector<16x128xi32>
    %51 = arith.shrui %25, %50 : vector<16x128xi32>
    %c1023_i32_10 = arith.constant 1023 : i32
    %52 = vector.broadcast %c1023_i32_10 : i32 to vector<16x128xi32>
    %53 = arith.andi %51, %52 : vector<16x128xi32>
    %c307_i32 = arith.constant 307 : i32
    %54 = vector.broadcast %c307_i32 : i32 to vector<16x128xi32>
    %55 = arith.cmpi uge, %53, %54 : vector<16x128xi32>
    %56 = arith.extui %55 : vector<16x128xi1> to vector<16x128xi32>
    %57 = arith.sitofp %56 : vector<16x128xi32> to vector<16x128xf32>
    %cst_11 = arith.constant 1.42857146 : f32
    %58 = vector.broadcast %cst_11 : f32 to vector<16x128xf32>
    %59 = arith.mulf %57, %58 : vector<16x128xf32>
    %60 = arith.mulf %0, %59 : vector<16x128xf32>
    %c0_12 = arith.constant 0 : index
    %c0_13 = arith.constant 0 : index
    %61 = vector.load %arg5[%c0_12, %c0_13] : memref<16x128xf32, #tpu.memory_space<vmem>>, vector<16x128xf32>
    tpu.vector_store %arg5[%c0_12, %c0_13], %60 {strides = array<i32>} : memref<16x128xf32, #tpu.memory_space<vmem>>, vector<16x128xf32>,
    return
  }
  func.func @transform_0(%arg0: i32, %arg1: memref<1xi32, #tpu.memory_space<smem>>) -> (i32, i32) {
    %c0_i32 = arith.constant 0 : i32
    %c0_i32_0 = arith.constant 0 : i32
    return %arg0, %c0_i32 : i32, i32
  }
  func.func @transform_1(%arg0: i32, %arg1: memref<1xi32, #tpu.memory_space<smem>>) -> (i32, i32) {
    %c0_i32 = arith.constant 0 : i32
    %c0_i32_0 = arith.constant 0 : i32
    return %arg0, %c0_i32 : i32, i32
  }
  func.func @transform_2(%arg0: i32, %arg1: memref<1xi32, #tpu.memory_space<smem>>) -> (i32, i32) {
    %c0_i32 = arith.constant 0 : i32
    %c0_i32_0 = arith.constant 0 : i32
    return %arg0, %c0_i32 : i32, i32
  }
  func.func @transform_3(%arg0: i32, %arg1: memref<1xi32, #tpu.memory_space<smem>>) -> (i32, i32) {
    %c0_i32 = arith.constant 0 : i32
    %c0_i32_0 = arith.constant 0 : i32
    return %arg0, %c0_i32 : i32, i32
  }
}

</mosaic_0001>

<llo_original>
// kernel: mdrop.1
$region0: #{mdrop.1}
  #allocation0 [shape = 'u32[]', space=smem, size = 0x4, offset = 0x4, fixed_abs, tag = 'smem constant byte address 0x4 - core index']
  #allocation1 [shape = 'u32[144,128]{1,0:T(1,128)}', space=vmem, size = 0x12000, scoped, tag = 'internal scratch']
  #allocation2 [shape = 's32[1]{0}', space=sflag, size = 0x4, scoped, tag = 'scoped memory for mdrop.1']
  #allocation3 [shape = 's32[1]{0:T(128)S(6)}', space=smem, size = 0x200, scoped, tag = 'prefetched SMEM operand 0']
  %s0 = inlined_call_operand.<no memory space> [shape: s32[1], index: 0, kind: input, shape index: {}]
  %s1 = inlined_call_operand.vmem [shape: f32[16,128], index: 1, kind: input, shape index: {}]
  %s2 = inlined_call_operand.vmem [shape: f32[16,128], index: 2, kind: output, shape index: {0}]
  %s3 = inlined_call_operand.vmem [shape: f32[16,128], index: 3, kind: output, shape index: {1}]
  %s4 = inlined_call_operand.vmem [shape: f32[16,128], index: 4, kind: output, shape index: {2}]
  %5 = xla_tuple %s2, %s3, %s4
  %s6 = sld [smem:[#allocation0]]
  $region30: #{mdrop.1} parent=0
    _
  %s8 = ssub.s32 1, %s6
  %s9 = scalar_select 0, %s8, %s6
  %10 = sst [smem:[#allocation3]] %s0
  // Predicated region
  $region2: #{mdrop.1} parent=0 // pred_check
    _
  $region3: #{mdrop.1} parent=0 // pred_check_branch
    %12 = sbr.rel (0) target = $region5
  $region4: #{mdrop.1} parent=0 // pred_region
    _
  $region5: #{mdrop.1} parent=0 // pred_fallthru
    _
  %v13 = vld [vmem:[%s1] sm:$0xff]
  %v14 = vld [vmem:[%s1 + $0x8] sm:$0xff]
  %v15 = vlaneseq
  %v16 = vshrl.u32 %v15, 7
  %v17 = vadd.s32 %v16, 8
  %v18 = vlaneseq
  %v19 = vand.u32 %v18, 127
  %s20 = smul.u32 0, 16
  %v21 = vstv %s20
  %v22 = vadd.s32 %v16, %v21
  %v23 = vadd.s32 %v17, %v21
  %v24 = vmul.u32 %v22, 128
  %v25 = vmul.u32 %v23, 128
  %v26 = vadd.s32 %v24, %v19
  %v27 = vadd.s32 %v25, %v19
  %s28 = sld [smem:[#allocation3]]
  %s29 = smul.u32 %s28, 2654435769
  %v30 = vstv %s29
  %v31 = vxor.u32 %v26, %v30
  %v32 = vxor.u32 %v27, %v30
  %v33 = vshrl.u32 %v31, 16
  %v34 = vshrl.u32 %v32, 16
  %v35 = vxor.u32 %v31, %v33
  %v36 = vxor.u32 %v32, %v34
  %v37 = vmul.u32 %v35, 2146121005
  %v38 = vmul.u32 %v36, 2146121005
  %v39 = vshrl.u32 %v37, 15
  %v40 = vshrl.u32 %v38, 15
  %v41 = vxor.u32 %v37, %v39
  %v42 = vxor.u32 %v38, %v40
  %v43 = vmul.u32 %v41, 2221713035
  %v44 = vmul.u32 %v42, 2221713035
  %v45 = vshrl.u32 %v43, 16
  %v46 = vshrl.u32 %v44, 16
  %v47 = vxor.u32 %v43, %v45
  %v48 = vxor.u32 %v44, %v46
  %v49 = vand.u32 %v47, 1023
  %v50 = vand.u32 %v48, 1023
  %vm51 = vcmp.ge.u32.totalorder %v49, 102
  %vm52 = vcmp.ge.u32.totalorder %v50, 102
  %v53 = vsel %vm51, 1, 0
  %v54 = vsel %vm52, 1, 0
  %v55 = vcvt.s32.f32 %v53
  %v56 = vcvt.s32.f32 %v54
  %v57 = vmul.f32 %v55, 1.1111112
  %v58 = vmul.f32 %v56, 1.1111112
  %v59 = vmul.f32 %v13, %v57
  %v60 = vmul.f32 %v14, %v58
  %61 = vst [vmem:[%s2] sm:$0xff] %v59
  %62 = vst [vmem:[%s2 + $0x8] sm:$0xff] %v60
  %v63 = vshrl.u32 %v47, 10
  %v64 = vshrl.u32 %v48, 10
  %v65 = vand.u32 %v63, 1023
  %v66 = vand.u32 %v64, 1023
  %vm67 = vcmp.ge.u32.totalorder %v65, 205
  %vm68 = vcmp.ge.u32.totalorder %v66, 205
  %v69 = vsel %vm67, 1, 0
  %v70 = vsel %vm68, 1, 0
  %v71 = vcvt.s32.f32 %v69
  %v72 = vcvt.s32.f32 %v70
  %v73 = vmul.f32 %v71, 1.25
  %v74 = vmul.f32 %v72, 1.25
  %v75 = vmul.f32 %v13, %v73
  %v76 = vmul.f32 %v14, %v74
  %77 = vst [vmem:[%s3] sm:$0xff] %v75
  %78 = vst [vmem:[%s3 + $0x8] sm:$0xff] %v76
  %v79 = vshrl.u32 %v47, 20
  %v80 = vshrl.u32 %v48, 20
  %v81 = vand.u32 %v79, 1023
  %v82 = vand.u32 %v80, 1023
  %vm83 = vcmp.ge.u32.totalorder %v81, 307
  %vm84 = vcmp.ge.u32.totalorder %v82, 307
  %v85 = vsel %vm83, 1, 0
  %v86 = vsel %vm84, 1, 0
  %v87 = vcvt.s32.f32 %v85
  %v88 = vcvt.s32.f32 %v86
  %v89 = vmul.f32 %v87, 1.4285715
  %v90 = vmul.f32 %v88, 1.4285715
  %v91 = vmul.f32 %v13, %v89
  %v92 = vmul.f32 %v14, %v90
  %93 = vst [vmem:[%s4] sm:$0xff] %v91
  %94 = vst [vmem:[%s4 + $0x8] sm:$0xff] %v92
  // Predicated region
  $region6: #{mdrop.1} parent=0 // pred_check
    _
  $region7: #{mdrop.1} parent=0 // pred_check_branch
    %96 = sbr.rel (0) target = $region9
  $region8: #{mdrop.1} parent=0 // pred_region
    _
  $region9: #{mdrop.1} parent=0 // pred_fallthru
    _
  // Predicated region
  $region10: #{mdrop.1} parent=0 // pred_check
    _
  $region11: #{mdrop.1} parent=0 // pred_check_branch
    %98 = sbr.rel (0) target = $region13
  $region12: #{mdrop.1} parent=0 // pred_region
    _
  $region13: #{mdrop.1} parent=0 // pred_fallthru
    _
  // Predicated region
  $region14: #{mdrop.1} parent=0 // pred_check
    _
  $region15: #{mdrop.1} parent=0 // pred_check_branch
    %100 = sbr.rel (0) target = $region17
  $region16: #{mdrop.1} parent=0 // pred_region
    _
  $region17: #{mdrop.1} parent=0 // pred_fallthru
    _
  // Predicated region
  $region18: #{mdrop.1} parent=0 // pred_check
    _
  $region19: #{mdrop.1} parent=0 // pred_check_branch
    %102 = sbr.rel (0) target = $region21
  $region20: #{mdrop.1} parent=0 // pred_region
    _
  $region21: #{mdrop.1} parent=0 // pred_fallthru
    _
  // Predicated region
  $region22: #{mdrop.1} parent=0 // pred_check
    _
  $region23: #{mdrop.1} parent=0 // pred_check_branch
    %104 = sbr.rel (0) target = $region25
  $region24: #{mdrop.1} parent=0 // pred_region
    _
  $region25: #{mdrop.1} parent=0 // pred_fallthru
    _
  // Predicated region
  $region26: #{mdrop.1} parent=0 // pred_check
    _
  $region27: #{mdrop.1} parent=0 // pred_check_branch
    %106 = sbr.rel (0) target = $region29
  $region28: #{mdrop.1} parent=0 // pred_region
    _
  $region29: #{mdrop.1} parent=0 // pred_fallthru
    _

</llo_original>
